<compile_context>
chip_gen: v7x
topology: tpu7x:2x2x1
jax: 0.10.0
libtpu: 0.0.40
codegen_flags: <defaults>
</compile_context>

<pallas_src>
import functools
import math

import jax
import jax.numpy as jnp
from jax.experimental import pallas as pl
from jax.experimental.pallas import tpu as pltpu

B, D, K = 8, 32, 4                       # demo batch, zd_dim, cond_modes
KD = K * D                               # 128  (lane-dense mixture axis)
N2 = 2 * KD + 128                        # 384  fused layer-2 output lanes
MAX_BB = 256                             # rows per grid block (128 also good on v5e)
NEG_BIG = -1e30                          # "-inf" bias for padded logit lanes
LOGC = -D / 2.0 * math.log(2.0 * math.pi)

# Row offsets inside the single packed constant slab (all 8-row aligned).
R_W1, R_B1 = 0, D                        # rows 0:32 fused W1, row 32 fused b1
R_W2, R_B2 = 40, 168                     # rows 40:168 fused W2, row 168 fused b2
R_RN = 176                               # rows 176:208 Rneg (z_d replication, -1)
R_SEG = 208                              # rows 208:336 per-mode segment-sum mask
SLAB_ROWS = 336


def _cond_kernel(zc_ref, zd_ref, slab_ref, out_ref, *, bb, n_valid):
    zc = zc_ref[...]                                    # (bb, D)
    zd = zd_ref[...]                                    # (bb, D)

    w1 = slab_ref[R_W1:R_W1 + D, 0:KD]                  # (32, 128) [mu|lv|wt|0]
    b1 = slab_ref[R_B1:R_B1 + 1, 0:KD]                  # (1, 128)
    w2 = slab_ref[R_W2:R_W2 + KD, :]                    # (128, 384) block-diagonal
    b2 = slab_ref[R_B2:R_B2 + 1, :]                     # (1, 384)  pad logits = -1e30
    rneg = slab_ref[R_RN:R_RN + D, :]                   # (32, 384) -replication of z_d
    seg = slab_ref[R_SEG:R_SEG + KD, 0:KD]              # (128, 128) per-mode sum mask

    # Fused layer 1 for all three heads: Linear + ReLU  (dropout_rate=0 -> no-op)
    h = jnp.maximum(jnp.dot(zc, w1, preferred_element_type=jnp.float32) + b1, 0.0)

    # Fused layer 2 + z_d replication folded in:
    #   lanes 0:128   = mu - z_d(tiled)   (sign irrelevant, squared below)
    #   lanes 128:256 = logvar pre-activation
    #   lanes 256:384 = mixture logits (real in 256:260, pads biased to -1e30)
    out2 = (jnp.dot(h, w2, preferred_element_type=jnp.float32)
            + jnp.dot(zd, rneg, preferred_element_type=jnp.float32) + b2)

    diff = out2[:, 0:KD]                                # (bb, 128)
    logvar = jnp.tanh(out2[:, KD:2 * KD])               # use_tanh=True
    logits = out2[:, 2 * KD:]                           # (bb, 128)

    var = jnp.exp(logvar)
    z = var * diff
    # TODO(synk): args.cov_off_diagonal == 'var' (tril(tri) @ z correction) not
    # enabled in this configuration (self.tri is None).
    # log(|var| + 1e-8) == logvar (= tanh(.)) to <1e-7 since var >= e^-1.
    inner = logvar - 0.5 * z * z                        # (bb, 128)

    # Segmented per-mode sum over the D lanes of each mode as ONE MXU matmul against
    # the constant block-indicator mask, then add raw logits (log_softmax folded into
    # the final subtraction of logsumexp(logits)).
    s = jnp.dot(inner, seg, preferred_element_type=jnp.float32) + logits
    m1 = jnp.max(s, axis=-1, keepdims=True)
    lse_s = m1 + jnp.log(jnp.sum(jnp.exp(s - m1), axis=-1, keepdims=True))
    m2 = jnp.max(logits, axis=-1, keepdims=True)
    lse_w = m2 + jnp.log(jnp.sum(jnp.exp(logits - m2), axis=-1, keepdims=True))

    rowvals = -(LOGC + lse_s - lse_w)                   # (bb, 1) per-sample -logpdf

    # Mask padded rows, reduce this block's rows, store one lane-dense (8,128) partial.
    rows = pl.program_id(0) * bb + jax.lax.broadcasted_iota(jnp.int32, (bb, 1), 0)
    rowvals = jnp.where(rows < n_valid, rowvals, 0.0)
    psum = jnp.sum(rowvals, axis=0, keepdims=True) * (1.0 / n_valid)   # (1, 1)
    out_ref[...] = jnp.broadcast_to(psum, (8, KD))


def pack_slab(p):
    """Pack the 14 tiny parameter arrays + constants into one (336,384) f32 slab.

    Call once and reuse; this is deliberately hoisted out of the jitted forward.
    """
    slab = jnp.zeros((SLAB_ROWS, N2), jnp.float32)
    # Fused layer-1 weight / bias (lanes 0:128).
    slab = slab.at[R_W1:R_W1 + D, 0:D].set(p['mu_w1'])
    slab = slab.at[R_W1:R_W1 + D, D:2 * D].set(p['lv_w1'])
    slab = slab.at[R_W1:R_W1 + D, 2 * D:3 * D].set(p['wt_w1'])
    slab = slab.at[R_B1, 0:D].set(p['mu_b1'][0])
    slab = slab.at[R_B1, D:2 * D].set(p['lv_b1'][0])
    slab = slab.at[R_B1, 2 * D:3 * D].set(p['wt_b1'][0])
    # Fused block-diagonal layer-2 weight / bias.
    slab = slab.at[R_W2:R_W2 + D, 0:KD].set(p['mu_w2'])
    slab = slab.at[R_W2 + D:R_W2 + 2 * D, KD:2 * KD].set(p['lv_w2'])
    slab = slab.at[R_W2 + 2 * D:R_W2 + 3 * D, 2 * KD:2 * KD + K].set(p['wt_w2'])
    slab = slab.at[R_B2, 0:KD].set(p['mu_b2'][0])
    slab = slab.at[R_B2, KD:2 * KD].set(p['lv_b2'][0])
    slab = slab.at[R_B2, 2 * KD:2 * KD + K].set(p['wt_b2'][0])
    slab = slab.at[R_B2, 2 * KD + K:].set(NEG_BIG)       # padded logit lanes -> -inf
    # Rneg: rneg[d, k*D + d] = -1  (folds z_d replication + subtraction into MXU).
    cols = jnp.arange(KD)
    slab = slab.at[R_RN + (cols % D), cols].set(-1.0)
    # Segment mask: seg[l, c] = 1 iff c < K and l // D == c.
    l = jnp.arange(KD)[:, None]
    c = jnp.arange(KD)[None, :]
    seg = jnp.logical_and(l // D == c, c < K).astype(jnp.float32)
    slab = slab.at[R_SEG:R_SEG + KD, 0:KD].set(seg)
    return slab


def _round_up(x, m):
    return ((x + m - 1) // m) * m


@jax.jit
def cond_kernel_forward(z_c, z_d, slab):
    batch = z_c.shape[0]
    bb = min(MAX_BB, _round_up(batch, 8))
    batch_pad = _round_up(batch, bb)
    nb = batch_pad // bb
    if batch_pad != batch:
        pad = batch_pad - batch
        z_c = jnp.pad(z_c, ((0, pad), (0, 0)))
        z_d = jnp.pad(z_d, ((0, pad), (0, 0)))

    kernel = functools.partial(_cond_kernel, bb=bb, n_valid=batch)
    out = pl.pallas_call(
        kernel,
        out_shape=jax.ShapeDtypeStruct((nb * 8, KD), jnp.float32),
        grid=(nb,),
        in_specs=[
            pl.BlockSpec((bb, D), lambda i: (i, 0)),
            pl.BlockSpec((bb, D), lambda i: (i, 0)),
            pl.BlockSpec((SLAB_ROWS, N2), lambda i: (0, 0)),
        ],
        out_specs=pl.BlockSpec((8, KD), lambda i: (i, 0)),
        compiler_params=pltpu.CompilerParams(
            dimension_semantics=("parallel",)),
    )(z_c, z_d, slab)

    # Each grid block wrote its (already batch-normalized) partial sum, broadcast
    # over an (8,128) tile; sum one representative row per block.
    return jnp.sum(out[::8, 0])


def _init_linear(key, fan_in, fan_out):
    # PyTorch nn.Linear default init: U(-1/sqrt(fan_in), 1/sqrt(fan_in))
    kw, kb = jax.random.split(key)
    bound = 1.0 / math.sqrt(fan_in)
    w = jax.random.uniform(kw, (fan_in, fan_out), jnp.float32, -bound, bound)
    b = jax.random.uniform(kb, (1, fan_out), jnp.float32, -bound, bound)
    return w, b


def init_params(key):
    keys = jax.random.split(key, 6)
    p = {}
    p['mu_w1'], p['mu_b1'] = _init_linear(keys[0], D, D)
    p['mu_w2'], p['mu_b2'] = _init_linear(keys[1], D, K * D)
    p['lv_w1'], p['lv_b1'] = _init_linear(keys[2], D, D)
    p['lv_w2'], p['lv_b2'] = _init_linear(keys[3], D, K * D)
    p['wt_w1'], p['wt_b1'] = _init_linear(keys[4], D, D)
    p['wt_w2'], p['wt_b2'] = _init_linear(keys[5], D, K)
    return p


def reference_forward(z_c, z_d, p):
    # Faithful to the PyTorch module (incl. the +1e-8 inside the log).
    def ff(x, w1, b1, w2, b2):
        return jnp.maximum(x @ w1 + b1, 0.0) @ w2 + b2
    mu = ff(z_c, p['mu_w1'], p['mu_b1'], p['mu_w2'], p['mu_b2'])
    logvar = ff(z_c, p['lv_w1'], p['lv_b1'], p['lv_w2'], p['lv_b2'])
    w = jax.nn.log_softmax(ff(z_c, p['wt_w1'], p['wt_b1'], p['wt_w2'], p['wt_b2']), -1)
    var = jnp.exp(jnp.tanh(logvar)).reshape(-1, K, D)
    mu = mu.reshape(-1, K, D)
    z = var * (z_d[:, None, :] - mu)
    s = jnp.sum(z ** 2, -1)
    s = -s / 2 + jnp.sum(jnp.log(jnp.abs(var) + 1e-8), -1) + w
    s = jax.scipy.special.logsumexp(s, -1)
    return jnp.mean(-(LOGC + s))


if __name__ == "__main__":
    key = jax.random.PRNGKey(0)
    kp, kc, kd = jax.random.split(key, 3)
    params = init_params(kp)
    slab = pack_slab(params)                 # packed once, reused across calls

    # Primary small-shape check (batch=8).
    z_c = jax.random.normal(kc, (B, D), jnp.float32)
    z_d = jax.random.normal(kd, (B, D), jnp.float32)
    out = jax.block_until_ready(cond_kernel_forward(z_c, z_d, slab))
    ref = jax.block_until_ready(reference_forward(z_c, z_d, params))
    assert jnp.allclose(out, ref, rtol=1e-4, atol=1e-4), (out, ref)

    # Secondary check exercising multi-block grid + padded-row masking (batch=300
    # -> bb=256, padded to 512, nb=2 grid blocks).
    kc2, kd2 = jax.random.split(jax.random.PRNGKey(1))
    z_c2 = jax.random.normal(kc2, (300, D), jnp.float32)
    z_d2 = jax.random.normal(kd2, (300, D), jnp.float32)
    out2 = jax.block_until_ready(cond_kernel_forward(z_c2, z_d2, slab))
    ref2 = jax.block_until_ready(reference_forward(z_c2, z_d2, params))
    assert jnp.allclose(out2, ref2, rtol=1e-4, atol=1e-4), (out2, ref2)

    print("KERNEL_OK")
</pallas_src>

<mosaic_0001>
module attributes {stable_mosaic.version = 11 : i64} {
  func.func @_cond_kernel(%arg0: i32, %arg1: memref<8x32xf32, #tpu.memory_space<vmem>>, %arg2: memref<8x32xf32, #tpu.memory_space<vmem>>, %arg3: memref<336x384xf32, #tpu.memory_space<vmem>>, %arg4: memref<8x128xf32, #tpu.memory_space<vmem>>) attributes {dimension_semantics = [#tpu.dimension_semantics<parallel>], iteration_bounds = array<i64: 1>, scalar_prefetch = 0 : i64, scratch_operands = 0 : i64, tpu.core_type = #tpu.core_type<tc>, window_params = [{transform_indices = @transform_0, window_bounds = array<i64: 8, 32>}, {transform_indices = @transform_1, window_bounds = array<i64: 8, 32>}, {pipeline_mode = #tpu.pipeline_mode<synchronous>, transform_indices = @transform_2, window_bounds = array<i64: 336, 384>}, {transform_indices = @transform_3, window_bounds = array<i64: 8, 128>}]} {
    %c0 = arith.constant 0 : index
    %c0_0 = arith.constant 0 : index
    %0 = vector.load %arg1[%c0, %c0_0] : memref<8x32xf32, #tpu.memory_space<vmem>>, vector<8x32xf32>
    %c0_1 = arith.constant 0 : index
    %c0_2 = arith.constant 0 : index
    %1 = vector.load %arg2[%c0_1, %c0_2] : memref<8x32xf32, #tpu.memory_space<vmem>>, vector<8x32xf32>
    %c0_3 = arith.constant 0 : index
    %c0_4 = arith.constant 0 : index
    %2 = vector.load %arg3[%c0_3, %c0_4] : memref<336x384xf32, #tpu.memory_space<vmem>>, vector<32x128xf32>
    %c32 = arith.constant 32 : index
    %c0_5 = arith.constant 0 : index
    %3 = vector.load %arg3[%c32, %c0_5] : memref<336x384xf32, #tpu.memory_space<vmem>>, vector<1x128xf32>
    %c40 = arith.constant 40 : index
    %c0_6 = arith.constant 0 : index
    %4 = vector.load %arg3[%c40, %c0_6] : memref<336x384xf32, #tpu.memory_space<vmem>>, vector<128x384xf32>
    %c168 = arith.constant 168 : index
    %c0_7 = arith.constant 0 : index
    %5 = vector.load %arg3[%c168, %c0_7] : memref<336x384xf32, #tpu.memory_space<vmem>>, vector<1x384xf32>
    %c176 = arith.constant 176 : index
    %c0_8 = arith.constant 0 : index
    %6 = vector.load %arg3[%c176, %c0_8] : memref<336x384xf32, #tpu.memory_space<vmem>>, vector<32x384xf32>
    %c208 = arith.constant 208 : index
    %c0_9 = arith.constant 0 : index
    %7 = vector.load %arg3[%c208, %c0_9] : memref<336x384xf32, #tpu.memory_space<vmem>>, vector<128x128xf32>
    %cst = arith.constant dense<0.000000e+00> : vector<8x128xf32>
    %8 = tpu.matmul %0, %2, %cst {dimension_numbers = #tpu.dot_dimension_numbers<[1], [0], [0], [1], [0, 0, 1, 1], [], []>} : vector<8x32xf32>, vector<32x128xf32>, vector<8x128xf32> -> vector<8x128xf32>
    %9 = vector.broadcast %3 : vector<1x128xf32> to vector<8x128xf32>
    %10 = arith.addf %8, %9 : vector<8x128xf32>
    %cst_10 = arith.constant 0.000000e+00 : f32
    %11 = vector.broadcast %cst_10 : f32 to vector<8x128xf32>
    %12 = arith.maximumf %10, %11 : vector<8x128xf32>
    %cst_11 = arith.constant dense<0.000000e+00> : vector<8x384xf32>
    %13 = tpu.matmul %12, %4, %cst_11 {dimension_numbers = #tpu.dot_dimension_numbers<[1], [0], [0], [1], [0, 0, 1, 1], [], []>} : vector<8x128xf32>, vector<128x384xf32>, vector<8x384xf32> -> vector<8x384xf32>
    %cst_12 = arith.constant dense<0.000000e+00> : vector<8x384xf32>
    %14 = tpu.matmul %1, %6, %cst_12 {dimension_numbers = #tpu.dot_dimension_numbers<[1], [0], [0], [1], [0, 0, 1, 1], [], []>} : vector<8x32xf32>, vector<32x384xf32>, vector<8x384xf32> -> vector<8x384xf32>
    %15 = arith.addf %13, %14 : vector<8x384xf32>
    %16 = vector.broadcast %5 : vector<1x384xf32> to vector<8x384xf32>
    %17 = arith.addf %15, %16 : vector<8x384xf32>
    %18 = vector.extract_strided_slice %17 {offsets = [0, 0], sizes = [8, 128], strides = [1, 1]} : vector<8x384xf32> to vector<8x128xf32>
    %19 = vector.extract_strided_slice %17 {offsets = [0, 128], sizes = [8, 128], strides = [1, 1]} : vector<8x384xf32> to vector<8x128xf32>
    %20 = math.tanh %19 : vector<8x128xf32>
    %21 = vector.extract_strided_slice %17 {offsets = [0, 256], sizes = [8, 128], strides = [1, 1]} : vector<8x384xf32> to vector<8x128xf32>
    %22 = math.exp %20 : vector<8x128xf32>
    %23 = arith.mulf %22, %18 : vector<8x128xf32>
    %cst_13 = arith.constant 5.000000e-01 : f32
    %24 = vector.broadcast %cst_13 : f32 to vector<8x128xf32>
    %25 = arith.mulf %24, %23 : vector<8x128xf32>
    %26 = arith.mulf %25, %23 : vector<8x128xf32>
    %27 = arith.subf %20, %26 : vector<8x128xf32>
    %cst_14 = arith.constant dense<0.000000e+00> : vector<8x128xf32>
    %28 = tpu.matmul %27, %7, %cst_14 {dimension_numbers = #tpu.dot_dimension_numbers<[1], [0], [0], [1], [0, 0, 1, 1], [], []>} : vector<8x128xf32>, vector<128x128xf32>, vector<8x128xf32> -> vector<8x128xf32>
    %29 = arith.addf %28, %21 : vector<8x128xf32>
    %cst_15 = arith.constant dense<0xFF800000> : vector<8xf32>
    %30 = vector.multi_reduction <maximumf>, %29, %cst_15 [1] : vector<8x128xf32> to vector<8xf32>
    %31 = vector.shape_cast %30 : vector<8xf32> to vector<8x1xf32>
    %32 = vector.broadcast %31 : vector<8x1xf32> to vector<8x128xf32>
    %33 = arith.subf %29, %32 : vector<8x128xf32>
    %34 = math.exp %33 : vector<8x128xf32>
    %cst_16 = arith.constant dense<0.000000e+00> : vector<8xf32>
    %35 = vector.multi_reduction <add>, %34, %cst_16 [1] : vector<8x128xf32> to vector<8xf32>
    %36 = vector.shape_cast %35 : vector<8xf32> to vector<8x1xf32>
    %37 = math.log %36 : vector<8x1xf32>
    %38 = arith.addf %31, %37 : vector<8x1xf32>
    %cst_17 = arith.constant dense<0xFF800000> : vector<8xf32>
    %39 = vector.multi_reduction <maximumf>, %21, %cst_17 [1] : vector<8x128xf32> to vector<8xf32>
    %40 = vector.shape_cast %39 : vector<8xf32> to vector<8x1xf32>
    %41 = vector.broadcast %40 : vector<8x1xf32> to vector<8x128xf32>
    %42 = arith.subf %21, %41 : vector<8x128xf32>
    %43 = math.exp %42 : vector<8x128xf32>
    %cst_18 = arith.constant dense<0.000000e+00> : vector<8xf32>
    %44 = vector.multi_reduction <add>, %43, %cst_18 [1] : vector<8x128xf32> to vector<8xf32>
    %45 = vector.shape_cast %44 : vector<8xf32> to vector<8x1xf32>
    %46 = math.log %45 : vector<8x1xf32>
    %47 = arith.addf %40, %46 : vector<8x1xf32>
    %cst_19 = arith.constant -29.4060326 : f32
    %48 = vector.broadcast %cst_19 : f32 to vector<8x1xf32>
    %49 = arith.addf %48, %38 : vector<8x1xf32>
    %50 = arith.subf %49, %47 : vector<8x1xf32>
    %cst_20 = arith.constant 0.000000e+00 : f32
    %51 = vector.broadcast %cst_20 : f32 to vector<8x1xf32>
    %52 = arith.subf %51, %50 : vector<8x1xf32>
    %c8_i32 = arith.constant 8 : i32
    %53 = arith.muli %arg0, %c8_i32 : i32
    %54 = tpu.iota {dimensions = array<i32: 0>} : vector<8x1xi32>
    %55 = vector.broadcast %53 : i32 to vector<8x1xi32>
    %56 = arith.addi %55, %54 : vector<8x1xi32>
    %c8_i32_21 = arith.constant 8 : i32
    %57 = vector.broadcast %c8_i32_21 : i32 to vector<8x1xi32>
    %58 = arith.cmpi slt, %56, %57 : vector<8x1xi32>
    %cst_22 = arith.constant 0.000000e+00 : f32
    %59 = vector.broadcast %cst_22 : f32 to vector<8x1xf32>
    %60 = arith.select %58, %52, %59 : vector<8x1xi1>, vector<8x1xf32>
    %cst_23 = arith.constant dense<0.000000e+00> : vector<1xf32>
    %61 = vector.multi_reduction <add>, %60, %cst_23 [0] : vector<8x1xf32> to vector<1xf32>
    %62 = vector.shape_cast %61 : vector<1xf32> to vector<1x1xf32>
    %cst_24 = arith.constant 1.250000e-01 : f32
    %63 = vector.broadcast %cst_24 : f32 to vector<1x1xf32>
    %64 = arith.mulf %62, %63 : vector<1x1xf32>
    %65 = vector.shape_cast %64 : vector<1x1xf32> to vector<1x1xf32>
    %66 = vector.broadcast %65 : vector<1x1xf32> to vector<8x128xf32>
    %c0_25 = arith.constant 0 : index
    %c0_26 = arith.constant 0 : index
    %67 = vector.load %arg4[%c0_25, %c0_26] : memref<8x128xf32, #tpu.memory_space<vmem>>, vector<8x128xf32>
    tpu.vector_store %arg4[%c0_25, %c0_26], %66 {strides = array<i32>} : memref<8x128xf32, #tpu.memory_space<vmem>>, vector<8x128xf32>,
    return
  }
  func.func @transform_0(%arg0: i32) -> (i32, i32) {
    %c0_i32 = arith.constant 0 : i32
    %c0_i32_0 = arith.constant 0 : i32
    return %arg0, %c0_i32 : i32, i32
  }
  func.func @transform_1(%arg0: i32) -> (i32, i32) {
    %c0_i32 = arith.constant 0 : i32
    %c0_i32_0 = arith.constant 0 : i32
    return %arg0, %c0_i32 : i32, i32
  }
  func.func @transform_2(%arg0: i32) -> (i32, i32) {
    %c0_i32 = arith.constant 0 : i32
    %c0_i32_0 = arith.constant 0 : i32
    %c0_i32_1 = arith.constant 0 : i32
    return %c0_i32, %c0_i32_0 : i32, i32
  }
  func.func @transform_3(%arg0: i32) -> (i32, i32) {
    %c0_i32 = arith.constant 0 : i32
    %c0_i32_0 = arith.constant 0 : i32
    return %arg0, %c0_i32 : i32, i32
  }
}

</mosaic_0001>

<llo_original>
// kernel: cond_kernel_forward.1
$region0: #{cond_kernel_forward.1}
  #allocation0 [shape = 'u32[]', space=smem, size = 0x4, offset = 0x4, fixed_abs, tag = 'smem constant byte address 0x4 - core index']
  #allocation1 [shape = 'u32[144,128]{1,0:T(1,128)}', space=vmem, size = 0x12000, scoped, tag = 'internal scratch']
  %s0 = inlined_call_operand.hbm [shape: f32[8,32], index: 0, kind: input, shape index: {}]
  %s1 = inlined_call_operand.hbm [shape: f32[8,32], index: 1, kind: input, shape index: {}]
  %s2 = inlined_call_operand.hbm [shape: f32[336,384], index: 2, kind: input, shape index: {}]
  %s3 = inlined_call_operand.vmem [shape: f32[8,128], index: 3, kind: output, shape index: {}]
  %s4 = sld [smem:[#allocation0]]
  $region34: #{cond_kernel_forward.1} parent=0
    _
  %s6 = ssub.s32 1, %s4
  %s7 = scalar_select 0, %s6, %s4
  $region1: #{cond_kernel_forward.1} parent=0
    #allocation2 [shape = 'u8[4096]{0}', space=vmem, size = 0x1000, scoped, tag = 'input window, operand 0, single buffered']
    #allocation3 [shape = 's32[1]{0}', space=sflag, size = 0x4, scoped, tag = 'scoped memory for cond_kernel_forward.1']
    #allocation4 [shape = 'u8[4096]{0}', space=vmem, size = 0x1000, scoped, tag = 'input window, operand 1, single buffered']
    #allocation5 [shape = 's32[1]{0}', space=sflag, size = 0x4, scoped, tag = 'scoped memory for cond_kernel_forward.1']
    #allocation6 [shape = 'u8[516096]{0}', space=vmem, size = 0x7e000, scoped, tag = 'input window, operand 2, single buffered']
    %8 = vsyncpa [#allocation3], 0
    %9 = vsyncpa [#allocation5], 0
    // Predicated region
    $region2: #{cond_kernel_forward.1} parent=1 // pred_check
      _
    $region3: #{cond_kernel_forward.1} parent=1 // pred_check_branch
      %11 = sbr.rel (0) target = $region5
    $region4: #{cond_kernel_forward.1} parent=1 // pred_region
      %s13 = ssub.s32 128, 128
      %14 = vsyncadd [#allocation3], %s13
      %s16 = sshll.u32 [#allocation2], 4
      %s17 = int_to_ptr.vmem [resolvable:$true] %s16
      %19 = dma.hbm_to_vmem [thread:$0]  %s0, 128, %s17, [#allocation3]
    $region5: #{cond_kernel_forward.1} parent=1 // pred_fallthru
      _
    // Predicated region
    $region6: #{cond_kernel_forward.1} parent=1 // pred_check
      _
    $region7: #{cond_kernel_forward.1} parent=1 // pred_check_branch
      %21 = sbr.rel (0) target = $region9
    $region8: #{cond_kernel_forward.1} parent=1 // pred_region
      %s23 = ssub.s32 128, 128
      %24 = vsyncadd [#allocation5], %s23
      %s26 = sshll.u32 [#allocation4], 4
      %s27 = int_to_ptr.vmem [resolvable:$true] %s26
      %29 = dma.hbm_to_vmem [thread:$0]  %s1, 128, %s27, [#allocation5]
    $region9: #{cond_kernel_forward.1} parent=1 // pred_fallthru
      _
    // Predicated region
    $region10: #{cond_kernel_forward.1} parent=1 // pred_check
      _
    $region11: #{cond_kernel_forward.1} parent=1 // pred_check_branch
      %31 = sbr.rel (0) target = $region13
    $region12: #{cond_kernel_forward.1} parent=1 // pred_region
      %s33 = ssub.s32 16128, 16128
      %34 = vsyncadd [#allocation5], %s33
      %s35 = sshll.u32 [#allocation6], 4
      %s36 = int_to_ptr.vmem [resolvable:$true] %s35
      %41 = dma.hbm_to_vmem [thread:$0]  %s2, 16128, %s36, [#allocation5], 384, 384, 24
    $region13: #{cond_kernel_forward.1} parent=1 // pred_fallthru
      _
    // Predicated region
    $region14: #{cond_kernel_forward.1} parent=1 // pred_check
      _
    $region15: #{cond_kernel_forward.1} parent=1 // pred_check_branch
      %43 = sbr.rel (0) target = $region17
    $region16: #{cond_kernel_forward.1} parent=1 // pred_region
      %44 = dma.done [#allocation3], 128
    $region17: #{cond_kernel_forward.1} parent=1 // pred_fallthru
      _
    // Predicated region
    $region18: #{cond_kernel_forward.1} parent=1 // pred_check
      _
    $region19: #{cond_kernel_forward.1} parent=1 // pred_check_branch
      %46 = sbr.rel (0) target = $region21
    $region20: #{cond_kernel_forward.1} parent=1 // pred_region
      %47 = dma.done [#allocation5], 128
    $region21: #{cond_kernel_forward.1} parent=1 // pred_fallthru
      _
    // Predicated region
    $region22: #{cond_kernel_forward.1} parent=1 // pred_check
      _
    $region23: #{cond_kernel_forward.1} parent=1 // pred_check_branch
      %49 = sbr.rel (0) target = $region25
    $region24: #{cond_kernel_forward.1} parent=1 // pred_region
      %50 = dma.done [#allocation5], 16128
    $region25: #{cond_kernel_forward.1} parent=1 // pred_fallthru
      _
    %v51 = vld [vmem:[#allocation2] sm:$0xff]
    %v52 = vld [vmem:[#allocation4] sm:$0xff]
    %v53 = vld [vmem:[#allocation6] sm:$0xff]
    %v54 = vld [vmem:[#allocation6 + $0x18] sm:$0xff]
    %v55 = vld [vmem:[#allocation6 + $0x30] sm:$0xff]
    %v56 = vld [vmem:[#allocation6 + $0x48] sm:$0xff]
    %v57 = vld [vmem:[#allocation6 + $0x60] ss:$0 sm:$0xff]
    %v58 = vld [vmem:[#allocation6 + $0x78] sm:$0xff]
    %v59 = vld [vmem:[#allocation6 + $0x80] sm:$0xff]
    %v60 = vld [vmem:[#allocation6 + $0x88] sm:$0xff]
    %v61 = vld [vmem:[#allocation6 + $0x90] sm:$0xff]
    %v62 = vld [vmem:[#allocation6 + $0x98] sm:$0xff]
    %v63 = vld [vmem:[#allocation6 + $0xa0] sm:$0xff]
    %v64 = vld [vmem:[#allocation6 + $0xa8] sm:$0xff]
    %v65 = vld [vmem:[#allocation6 + $0xb0] sm:$0xff]
    %v66 = vld [vmem:[#allocation6 + $0xb8] sm:$0xff]
    %v67 = vld [vmem:[#allocation6 + $0xc0] sm:$0xff]
    %v68 = vld [vmem:[#allocation6 + $0xc8] sm:$0xff]
    %v69 = vld [vmem:[#allocation6 + $0xd0] sm:$0xff]
    %v70 = vld [vmem:[#allocation6 + $0xd8] sm:$0xff]
    %v71 = vld [vmem:[#allocation6 + $0xe0] sm:$0xff]
    %v72 = vld [vmem:[#allocation6 + $0xe8] sm:$0xff]
    %v73 = vld [vmem:[#allocation6 + $0xf0] sm:$0xff]
    %v74 = vld [vmem:[#allocation6 + $0xf8] sm:$0xff]
    %v75 = vld [vmem:[#allocation6 + $0x100] sm:$0xff]
    %v76 = vld [vmem:[#allocation6 + $0x108] sm:$0xff]
    %v77 = vld [vmem:[#allocation6 + $0x110] sm:$0xff]
    %v78 = vld [vmem:[#allocation6 + $0x118] sm:$0xff]
    %v79 = vld [vmem:[#allocation6 + $0x120] sm:$0xff]
    %v80 = vld [vmem:[#allocation6 + $0x128] sm:$0xff]
    %v81 = vld [vmem:[#allocation6 + $0x130] sm:$0xff]
    %v82 = vld [vmem:[#allocation6 + $0x138] sm:$0xff]
    %v83 = vld [vmem:[#allocation6 + $0x140] sm:$0xff]
    %v84 = vld [vmem:[#allocation6 + $0x148] sm:$0xff]
    %v85 = vld [vmem:[#allocation6 + $0x150] sm:$0xff]
    %v86 = vld [vmem:[#allocation6 + $0x158] sm:$0xff]
    %v87 = vld [vmem:[#allocation6 + $0x160] sm:$0xff]
    %v88 = vld [vmem:[#allocation6 + $0x168] sm:$0xff]
    %v89 = vld [vmem:[#allocation6 + $0x170] sm:$0xff]
    %v90 = vld [vmem:[#allocation6 + $0x178] sm:$0xff]
    %v91 = vld [vmem:[#allocation6 + $0x180] sm:$0xff]
    %v92 = vld [vmem:[#allocation6 + $0x188] sm:$0xff]
    %v93 = vld [vmem:[#allocation6 + $0x190] sm:$0xff]
    %v94 = vld [vmem:[#allocation6 + $0x198] sm:$0xff]
    %v95 = vld [vmem:[#allocation6 + $0x1a0] sm:$0xff]
    %v96 = vld [vmem:[#allocation6 + $0x1a8] sm:$0xff]
    %v97 = vld [vmem:[#allocation6 + $0x1b0] sm:$0xff]
    %v98 = vld [vmem:[#allocation6 + $0x1b8] sm:$0xff]
    %v99 = vld [vmem:[#allocation6 + $0x1c0] sm:$0xff]
    %v100 = vld [vmem:[#allocation6 + $0x1c8] sm:$0xff]
    %v101 = vld [vmem:[#allocation6 + $0x1d0] sm:$0xff]
    %v102 = vld [vmem:[#allocation6 + $0x1d8] sm:$0xff]
    %v103 = vld [vmem:[#allocation6 + $0x1e0] sm:$0xff]
    %v104 = vld [vmem:[#allocation6 + $0x1e8] sm:$0xff]
    %v105 = vld [vmem:[#allocation6 + $0x1f0] sm:$0xff]
    %s106 = scalar_lea.vmem [#allocation6], 504
    %v107 = vld [vmem:[%s106] ss:$8 sm:$0x7]
    %v108 = vld [vmem:[#allocation6 + $0x210] sm:$0xff]
    %v109 = vld [vmem:[#allocation6 + $0x218] sm:$0xff]
    %v110 = vld [vmem:[#allocation6 + $0x220] sm:$0xff]
    %v111 = vld [vmem:[#allocation6 + $0x228] sm:$0xff]
    %v112 = vld [vmem:[#allocation6 + $0x230] sm:$0xff]
    %v113 = vld [vmem:[#allocation6 + $0x238] sm:$0xff]
    %v114 = vld [vmem:[#allocation6 + $0x240] sm:$0xff]
    %v115 = vld [vmem:[#allocation6 + $0x248] sm:$0xff]
    %v116 = vld [vmem:[#allocation6 + $0x250] sm:$0xff]
    %v117 = vld [vmem:[#allocation6 + $0x258] sm:$0xff]
    %v118 = vld [vmem:[#allocation6 + $0x260] sm:$0xff]
    %v119 = vld [vmem:[#allocation6 + $0x268] sm:$0xff]
    %v120 = vld [vmem:[#allocation6 + $0x270] sm:$0xff]
    %v121 = vld [vmem:[#allocation6 + $0x288] sm:$0xff]
    %v122 = vld [vmem:[#allocation6 + $0x2a0] sm:$0xff]
    %v123 = vld [vmem:[#allocation6 + $0x2b8] sm:$0xff]
    %v124 = vld [vmem:[#allocation6 + $0x2d0] sm:$0xff]
    %v125 = vld [vmem:[#allocation6 + $0x2e8] sm:$0xff]
    %v126 = vld [vmem:[#allocation6 + $0x300] sm:$0xff]
    %v127 = vld [vmem:[#allocation6 + $0x318] sm:$0xff]
    %v128 = vld [vmem:[#allocation6 + $0x330] sm:$0xff]
    %v129 = vld [vmem:[#allocation6 + $0x348] sm:$0xff]
    %v130 = vld [vmem:[#allocation6 + $0x360] sm:$0xff]
    %v131 = vld [vmem:[#allocation6 + $0x378] sm:$0xff]
    %v132 = vld [vmem:[#allocation6 + $0x390] sm:$0xff]
    %v133 = vld [vmem:[#allocation6 + $0x3a8] sm:$0xff]
    %v134 = vld [vmem:[#allocation6 + $0x3c0] sm:$0xff]
    %v135 = vld [vmem:[#allocation6 + $0x3d8] sm:$0xff]
    %vm136 = vcmask 261120
    %v138 = vsel %vm136, %v51, 0
    %140 = vmatprep.subr.mxu0 0.0
    %141 = vmatpush1.msra.mxu0 %v53
    %142 = vmatprep.subr.mxu0 0.0
    %143 = vmatpush1.msra.mxu0 %v54
    %144 = vmatprep.subr.mxu0 0.0
    %145 = vmatpush1.msra.mxu0 %v55
    %146 = vmatprep.subr.mxu0 0.0
    %147 = vmatpush1.msra.mxu0 %v56
    %148 = vmatprep.subr.mxu0 0.0
    %149 = vmatpush1.msra.mxu0 0.0
    %150 = vmatprep.subr.mxu0 0.0
    %151 = vmatpush1.msra.mxu0 0.0
    %152 = vmatprep.subr.mxu0 0.0
    %153 = vmatpush1.msra.mxu0 0.0
    %154 = vmatprep.subr.mxu0 0.0
    %155 = vmatpush1.msra.mxu0 0.0
    %156 = vmatprep.subr.mxu0 0.0
    %157 = vmatpush1.msra.mxu0 0.0
    %158 = vmatprep.subr.mxu0 0.0
    %159 = vmatpush1.msra.mxu0 0.0
    %160 = vmatprep.subr.mxu0 0.0
    %161 = vmatpush1.msra.mxu0 0.0
    %162 = vmatprep.subr.mxu0 0.0
    %163 = vmatpush1.msra.mxu0 0.0
    %164 = vmatprep.subr.mxu0 0.0
    %165 = vmatpush1.msra.mxu0 0.0
    %166 = vmatprep.subr.mxu0 0.0
    %167 = vmatpush1.msra.mxu0 0.0
    %168 = vmatprep.subr.mxu0 0.0
    %169 = vmatpush1.msra.mxu0 0.0
    %170 = vmatprep.subr.mxu0 0.0
    %171 = vmatpush1.msra.mxu0 0.0
    %172 = vmatprep.subr.mxu0 0.0
    %173 = vmatpush1.msra.mxu0 0.0
    %174 = vmatprep.subr.mxu0 0.0
    %175 = vmatpush1.msra.mxu0 0.0
    %176 = vmatprep.subr.mxu0 0.0
    %177 = vmatpush1.msra.mxu0 0.0
    %178 = vmatprep.subr.mxu0 0.0
    %179 = vmatpush1.msra.mxu0 0.0
    %180 = vmatprep.subr.mxu0 0.0
    %181 = vmatpush1.msra.mxu0 0.0
    %182 = vmatprep.subr.mxu0 0.0
    %183 = vmatpush1.msra.mxu0 0.0
    %184 = vmatprep.subr.mxu0 0.0
    %185 = vmatpush1.msra.mxu0 0.0
    %186 = vmatprep.subr.mxu0 0.0
    %187 = vmatpush1.msra.mxu0 0.0
    %188 = vmatprep.subr.mxu0 0.0
    %189 = vmatpush1.msra.mxu0 0.0
    %190 = vmatprep.subr.mxu0 0.0
    %191 = vmatpush1.msra.mxu0 0.0
    %192 = vmatprep.subr.mxu0 0.0
    %193 = vmatpush1.msra.mxu0 0.0
    %194 = vmatprep.subr.mxu0 0.0
    %195 = vmatpush1.msra.mxu0 0.0
    %196 = vmatprep.subr.mxu0 0.0
    %197 = vmatpush1.msra.mxu0 0.0
    %198 = vmatprep.subr.mxu0 0.0
    %199 = vmatpush1.msra.mxu0 0.0
    %200 = vmatprep.subr.mxu0 0.0
    %201 = vmatpush1.msra.mxu0 0.0
    %202 = vmatprep.subr.mxu0 0.0
    %203 = vmatpush1.msra.mxu0 0.0
    %204 = vmatprep.mubr.f32.mxu0 0.0
    %205 = vmatmul.mubr.f32.gmra.mrb[0].mxu0 %v138
    %v206 = vpop.f32.mrb[0].mxu0
    %v207 = vadd.f32 %v57, %v206
    %v208 = vpop.f32.mrb[0].mxu0
    %209 = vdwg.mxu0
    %v210 = vmax.f32 %v207, 0.0
    %v212 = vsel %vm136, %v52, 0
    %214 = vmatprep.subr.mxu0 %v109
    %215 = vmatpush1.msra.mxu0 %v108
    %216 = vmatprep.subr.mxu0 %v112
    %217 = vmatpush1.msra.mxu0 %v111
    %218 = vmatprep.subr.mxu0 %v115
    %219 = vmatpush1.msra.mxu0 %v114
    %220 = vmatprep.subr.mxu0 %v118
    %221 = vmatpush1.msra.mxu0 %v117
    %222 = vmatprep.subr.mxu0 0.0
    %223 = vmatpush1.msra.mxu0 0.0
    %224 = vmatprep.subr.mxu0 0.0
    %225 = vmatpush1.msra.mxu0 0.0
    %226 = vmatprep.subr.mxu0 0.0
    %227 = vmatpush1.msra.mxu0 0.0
    %228 = vmatprep.subr.mxu0 0.0
    %229 = vmatpush1.msra.mxu0 0.0
    %230 = vmatprep.subr.mxu0 0.0
    %231 = vmatpush1.msra.mxu0 0.0
    %232 = vmatprep.subr.mxu0 0.0
    %233 = vmatpush1.msra.mxu0 0.0
    %234 = vmatprep.subr.mxu0 0.0
    %235 = vmatpush1.msra.mxu0 0.0
    %236 = vmatprep.subr.mxu0 0.0
    %237 = vmatpush1.msra.mxu0 0.0
    %238 = vmatprep.subr.mxu0 0.0
    %239 = vmatpush1.msra.mxu0 0.0
    %240 = vmatprep.subr.mxu0 0.0
    %241 = vmatpush1.msra.mxu0 0.0
    %242 = vmatprep.subr.mxu0 0.0
    %243 = vmatpush1.msra.mxu0 0.0
    %244 = vmatprep.subr.mxu0 0.0
    %245 = vmatpush1.msra.mxu0 0.0
    %246 = vmatprep.subr.mxu0 0.0
    %247 = vmatpush1.msra.mxu0 0.0
    %248 = vmatprep.subr.mxu0 0.0
    %249 = vmatpush1.msra.mxu0 0.0
    %250 = vmatprep.subr.mxu0 0.0
    %251 = vmatpush1.msra.mxu0 0.0
    %252 = vmatprep.subr.mxu0 0.0
    %253 = vmatpush1.msra.mxu0 0.0
    %254 = vmatprep.subr.mxu0 0.0
    %255 = vmatpush1.msra.mxu0 0.0
    %256 = vmatprep.subr.mxu0 0.0
    %257 = vmatpush1.msra.mxu0 0.0
    %258 = vmatprep.subr.mxu0 0.0
    %259 = vmatpush1.msra.mxu0 0.0
    %260 = vmatprep.subr.mxu0 0.0
    %261 = vmatpush1.msra.mxu0 0.0
    %262 = vmatprep.subr.mxu0 0.0
    %263 = vmatpush1.msra.mxu0 0.0
    %264 = vmatprep.subr.mxu0 0.0
    %265 = vmatpush1.msra.mxu0 0.0
    %266 = vmatprep.subr.mxu0 0.0
    %267 = vmatpush1.msra.mxu0 0.0
    %268 = vmatprep.subr.mxu0 0.0
    %269 = vmatpush1.msra.mxu0 0.0
    %270 = vmatprep.subr.mxu0 0.0
    %271 = vmatpush1.msra.mxu0 0.0
    %272 = vmatprep.subr.mxu0 0.0
    %273 = vmatpush1.msra.mxu0 0.0
    %274 = vmatprep.subr.mxu0 0.0
    %275 = vmatpush1.msra.mxu0 0.0
    %276 = vmatprep.subr.mxu0 0.0
    %277 = vmatpush1.msra.mxu0 0.0
    %278 = vmatprep.mubr.f32.mxu0 0.0
    %279 = vmatmul.mubr.f32.gmra.mrb[0].mxu0 %v212
    %v280 = vpop.f32.mrb[0].mxu0
    %v281 = vadd.f32 0.0, %v280
    %v282 = vpop.f32.mrb[0].mxu0
    %v283 = vadd.f32 0.0, %v282
    %284 = vdwg.mxu0
    %285 = vmatprep.subr.mxu0 0.0
    %286 = vmatpush1.msra.mxu0 %v110
    %287 = vmatprep.subr.mxu0 0.0
    %288 = vmatpush1.msra.mxu0 %v113
    %289 = vmatprep.subr.mxu0 0.0
    %290 = vmatpush1.msra.mxu0 %v116
    %291 = vmatprep.subr.mxu0 0.0
    %292 = vmatpush1.msra.mxu0 %v119
    %293 = vmatprep.subr.mxu0 0.0
    %294 = vmatpush1.msra.mxu0 0.0
    %295 = vmatprep.subr.mxu0 0.0
    %296 = vmatpush1.msra.mxu0 0.0
    %297 = vmatprep.subr.mxu0 0.0
    %298 = vmatpush1.msra.mxu0 0.0
    %299 = vmatprep.subr.mxu0 0.0
    %300 = vmatpush1.msra.mxu0 0.0
    %301 = vmatprep.subr.mxu0 0.0
    %302 = vmatpush1.msra.mxu0 0.0
    %303 = vmatprep.subr.mxu0 0.0
    %304 = vmatpush1.msra.mxu0 0.0
    %305 = vmatprep.subr.mxu0 0.0
    %306 = vmatpush1.msra.mxu0 0.0
    %307 = vmatprep.subr.mxu0 0.0
    %308 = vmatpush1.msra.mxu0 0.0
    %309 = vmatprep.subr.mxu0 0.0
    %310 = vmatpush1.msra.mxu0 0.0
    %311 = vmatprep.subr.mxu0 0.0
    %312 = vmatpush1.msra.mxu0 0.0
    %313 = vmatprep.subr.mxu0 0.0
    %314 = vmatpush1.msra.mxu0 0.0
    %315 = vmatprep.subr.mxu0 0.0
    %316 = vmatpush1.msra.mxu0 0.0
    %317 = vmatprep.subr.mxu0 0.0
    %318 = vmatpush1.msra.mxu0 0.0
    %319 = vmatprep.subr.mxu0 0.0
    %320 = vmatpush1.msra.mxu0 0.0
    %321 = vmatprep.subr.mxu0 0.0
    %322 = vmatpush1.msra.mxu0 0.0
    %323 = vmatprep.subr.mxu0 0.0
    %324 = vmatpush1.msra.mxu0 0.0
    %325 = vmatprep.subr.mxu0 0.0
    %326 = vmatpush1.msra.mxu0 0.0
    %327 = vmatprep.subr.mxu0 0.0
    %328 = vmatpush1.msra.mxu0 0.0
    %329 = vmatprep.subr.mxu0 0.0
    %330 = vmatpush1.msra.mxu0 0.0
    %331 = vmatprep.subr.mxu0 0.0
    %332 = vmatpush1.msra.mxu0 0.0
    %333 = vmatprep.subr.mxu0 0.0
    %334 = vmatpush1.msra.mxu0 0.0
    %335 = vmatprep.subr.mxu0 0.0
    %336 = vmatpush1.msra.mxu0 0.0
    %337 = vmatprep.subr.mxu0 0.0
    %338 = vmatpush1.msra.mxu0 0.0
    %339 = vmatprep.subr.mxu0 0.0
    %340 = vmatpush1.msra.mxu0 0.0
    %341 = vmatprep.subr.mxu0 0.0
    %342 = vmatpush1.msra.mxu0 0.0
    %343 = vmatprep.subr.mxu0 0.0
    %344 = vmatpush1.msra.mxu0 0.0
    %345 = vmatprep.subr.mxu0 0.0
    %346 = vmatpush1.msra.mxu0 0.0
    %347 = vmatprep.subr.mxu0 0.0
    %348 = vmatpush1.msra.mxu0 0.0
    %349 = vmatprep.mubr.f32.mxu0 0.0
    %350 = vmatmul.mubr.f32.gmra.mrb[0].mxu0 %v212
    %v351 = vpop.f32.mrb[0].mxu0
    %v352 = vadd.f32 0.0, %v351
    %v353 = vpop.f32.mrb[0].mxu0
    %354 = vdwg.mxu0
    %355 = vmatprep.subr.mxu0 %v59
    %356 = vmatpush1.msra.mxu0 %v58
    %357 = vmatprep.subr.mxu0 %v62
    %358 = vmatpush1.msra.mxu0 %v61
    %359 = vmatprep.subr.mxu0 %v65
    %360 = vmatpush1.msra.mxu0 %v64
    %361 = vmatprep.subr.mxu0 %v68
    %362 = vmatpush1.msra.mxu0 %v67
    %363 = vmatprep.subr.mxu0 %v71
    %364 = vmatpush1.msra.mxu0 %v70
    %365 = vmatprep.subr.mxu0 %v74
    %366 = vmatpush1.msra.mxu0 %v73
    %367 = vmatprep.subr.mxu0 %v77
    %368 = vmatpush1.msra.mxu0 %v76
    %369 = vmatprep.subr.mxu0 %v80
    %370 = vmatpush1.msra.mxu0 %v79
    %371 = vmatprep.subr.mxu0 %v83
    %372 = vmatpush1.msra.mxu0 %v82
    %373 = vmatprep.subr.mxu0 %v86
    %374 = vmatpush1.msra.mxu0 %v85
    %375 = vmatprep.subr.mxu0 %v89
    %376 = vmatpush1.msra.mxu0 %v88
    %377 = vmatprep.subr.mxu0 %v92
    %378 = vmatpush1.msra.mxu0 %v91
    %379 = vmatprep.subr.mxu0 %v95
    %380 = vmatpush1.msra.mxu0 %v94
    %381 = vmatprep.subr.mxu0 %v98
    %382 = vmatpush1.msra.mxu0 %v97
    %383 = vmatprep.subr.mxu0 %v101
    %384 = vmatpush1.msra.mxu0 %v100
    %385 = vmatprep.subr.mxu0 %v104
    %386 = vmatpush1.msra.mxu0 %v103
    %387 = vmatprep.subr.mxu0 0.0
    %388 = vmatpush1.msra.mxu0 0.0
    %389 = vmatprep.subr.mxu0 0.0
    %390 = vmatpush1.msra.mxu0 0.0
    %391 = vmatprep.subr.mxu0 0.0
    %392 = vmatpush1.msra.mxu0 0.0
    %393 = vmatprep.subr.mxu0 0.0
    %394 = vmatpush1.msra.mxu0 0.0
    %395 = vmatprep.subr.mxu0 0.0
    %396 = vmatpush1.msra.mxu0 0.0
    %397 = vmatprep.subr.mxu0 0.0
    %398 = vmatpush1.msra.mxu0 0.0
    %399 = vmatprep.subr.mxu0 0.0
    %400 = vmatpush1.msra.mxu0 0.0
    %401 = vmatprep.subr.mxu0 0.0
    %402 = vmatpush1.msra.mxu0 0.0
    %403 = vmatprep.subr.mxu0 0.0
    %404 = vmatpush1.msra.mxu0 0.0
    %405 = vmatprep.subr.mxu0 0.0
    %406 = vmatpush1.msra.mxu0 0.0
    %407 = vmatprep.subr.mxu0 0.0
    %408 = vmatpush1.msra.mxu0 0.0
    %409 = vmatprep.subr.mxu0 0.0
    %410 = vmatpush1.msra.mxu0 0.0
    %411 = vmatprep.subr.mxu0 0.0
    %412 = vmatpush1.msra.mxu0 0.0
    %413 = vmatprep.subr.mxu0 0.0
    %414 = vmatpush1.msra.mxu0 0.0
    %415 = vmatprep.subr.mxu0 0.0
    %416 = vmatpush1.msra.mxu0 0.0
    %417 = vmatprep.subr.mxu0 0.0
    %418 = vmatpush1.msra.mxu0 0.0
    %419 = vmatprep.mubr.f32.mxu0 0.0
    %420 = vmatmul.mubr.f32.gmra.mrb[0].mxu0 %v210
    %v421 = vpop.f32.mrb[0].mxu0
    %v422 = vadd.f32 %v281, %v421
    %v423 = vpop.f32.mrb[0].mxu0
    %v424 = vadd.f32 %v283, %v423
    %425 = vdwg.mxu0
    %426 = vmatprep.subr.mxu0 0.0
    %427 = vmatpush1.msra.mxu0 %v60
    %428 = vmatprep.subr.mxu0 0.0
    %429 = vmatpush1.msra.mxu0 %v63
    %430 = vmatprep.subr.mxu0 0.0
    %431 = vmatpush1.msra.mxu0 %v66
    %432 = vmatprep.subr.mxu0 0.0
    %433 = vmatpush1.msra.mxu0 %v69
    %434 = vmatprep.subr.mxu0 0.0
    %435 = vmatpush1.msra.mxu0 %v72
    %436 = vmatprep.subr.mxu0 0.0
    %437 = vmatpush1.msra.mxu0 %v75
    %438 = vmatprep.subr.mxu0 0.0
    %439 = vmatpush1.msra.mxu0 %v78
    %440 = vmatprep.subr.mxu0 0.0
    %441 = vmatpush1.msra.mxu0 %v81
    %442 = vmatprep.subr.mxu0 0.0
    %443 = vmatpush1.msra.mxu0 %v84
    %444 = vmatprep.subr.mxu0 0.0
    %445 = vmatpush1.msra.mxu0 %v87
    %446 = vmatprep.subr.mxu0 0.0
    %447 = vmatpush1.msra.mxu0 %v90
    %448 = vmatprep.subr.mxu0 0.0
    %449 = vmatpush1.msra.mxu0 %v93
    %450 = vmatprep.subr.mxu0 0.0
    %451 = vmatpush1.msra.mxu0 %v96
    %452 = vmatprep.subr.mxu0 0.0
    %453 = vmatpush1.msra.mxu0 %v99
    %454 = vmatprep.subr.mxu0 0.0
    %455 = vmatpush1.msra.mxu0 %v102
    %456 = vmatprep.subr.mxu0 0.0
    %457 = vmatpush1.msra.mxu0 %v105
    %458 = vmatprep.subr.mxu0 0.0
    %459 = vmatpush1.msra.mxu0 0.0
    %460 = vmatprep.subr.mxu0 0.0
    %461 = vmatpush1.msra.mxu0 0.0
    %462 = vmatprep.subr.mxu0 0.0
    %463 = vmatpush1.msra.mxu0 0.0
    %464 = vmatprep.subr.mxu0 0.0
    %465 = vmatpush1.msra.mxu0 0.0
    %466 = vmatprep.subr.mxu0 0.0
    %467 = vmatpush1.msra.mxu0 0.0
    %468 = vmatprep.subr.mxu0 0.0
    %469 = vmatpush1.msra.mxu0 0.0
    %470 = vmatprep.subr.mxu0 0.0
    %471 = vmatpush1.msra.mxu0 0.0
    %472 = vmatprep.subr.mxu0 0.0
    %473 = vmatpush1.msra.mxu0 0.0
    %474 = vmatprep.subr.mxu0 0.0
    %475 = vmatpush1.msra.mxu0 0.0
    %476 = vmatprep.subr.mxu0 0.0
    %477 = vmatpush1.msra.mxu0 0.0
    %478 = vmatprep.subr.mxu0 0.0
    %479 = vmatpush1.msra.mxu0 0.0
    %480 = vmatprep.subr.mxu0 0.0
    %481 = vmatpush1.msra.mxu0 0.0
    %482 = vmatprep.subr.mxu0 0.0
    %483 = vmatpush1.msra.mxu0 0.0
    %484 = vmatprep.subr.mxu0 0.0
    %485 = vmatpush1.msra.mxu0 0.0
    %486 = vmatprep.subr.mxu0 0.0
    %487 = vmatpush1.msra.mxu0 0.0
    %488 = vmatprep.subr.mxu0 0.0
    %489 = vmatpush1.msra.mxu0 0.0
    %490 = vmatprep.mubr.f32.mxu0 0.0
    %491 = vmatmul.mubr.f32.gmra.mrb[0].mxu0 %v210
    %v492 = vpop.f32.mrb[0].mxu0
    %v493 = vadd.f32 %v352, %v492
    %v494 = vpop.f32.mrb[0].mxu0
    %495 = vdwg.mxu0
    %v497 = vlaneseq
    %v498 = vshrl.u32 %v497, 7
    %v499 = vsub.s32 0, %v498
    %v500 = vrot.slane %v107, %v499
    %v501 = vlaneseq
    %v502 = vshrl.u32 %v501, 7
    %v503 = vsub.s32 1, %v502
    %v504 = vrot.slane %v107, %v503
    %v505 = vlaneseq
    %v506 = vshrl.u32 %v505, 7
    %v507 = vsub.s32 2, %v506
    %v508 = vrot.slane %v107, %v507
    %v512 = vadd.f32 %v422, %v500
    %v513 = vadd.f32 %v424, %v504
    %v514 = vadd.f32 %v493, %v508
    %v515 = vtanh.pop %v513
    %v516 = vmul.f32 %v515, 1.442695
    %v517 = vpow.pop %v516
    %v518 = vmul.f32 %v517, %v512
    %v519 = vmul.f32 %v518, 0.5
    %v520 = vmul.f32 %v519, %v518
    %v521 = vsub.f32 %v515, %v520
    %522 = vmatprep.subr.mxu0 0.0
    %523 = vmatpush1.msra.mxu0 %v120
    %524 = vmatprep.subr.mxu0 0.0
    %525 = vmatpush1.msra.mxu0 %v121
    %526 = vmatprep.subr.mxu0 0.0
    %527 = vmatpush1.msra.mxu0 %v122
    %528 = vmatprep.subr.mxu0 0.0
    %529 = vmatpush1.msra.mxu0 %v123
    %530 = vmatprep.subr.mxu0 0.0
    %531 = vmatpush1.msra.mxu0 %v124
    %532 = vmatprep.subr.mxu0 0.0
    %533 = vmatpush1.msra.mxu0 %v125
    %534 = vmatprep.subr.mxu0 0.0
    %535 = vmatpush1.msra.mxu0 %v126
    %536 = vmatprep.subr.mxu0 0.0
    %537 = vmatpush1.msra.mxu0 %v127
    %538 = vmatprep.subr.mxu0 0.0
    %539 = vmatpush1.msra.mxu0 %v128
    %540 = vmatprep.subr.mxu0 0.0
    %541 = vmatpush1.msra.mxu0 %v129
    %542 = vmatprep.subr.mxu0 0.0
    %543 = vmatpush1.msra.mxu0 %v130
    %544 = vmatprep.subr.mxu0 0.0
    %545 = vmatpush1.msra.mxu0 %v131
    %546 = vmatprep.subr.mxu0 0.0
    %547 = vmatpush1.msra.mxu0 %v132
    %548 = vmatprep.subr.mxu0 0.0
    %549 = vmatpush1.msra.mxu0 %v133
    %550 = vmatprep.subr.mxu0 0.0
    %551 = vmatpush1.msra.mxu0 %v134
    %552 = vmatprep.subr.mxu0 0.0
    %553 = vmatpush1.msra.mxu0 %v135
    %554 = vmatprep.subr.mxu0 0.0
    %555 = vmatpush1.msra.mxu0 0.0
    %556 = vmatprep.subr.mxu0 0.0
    %557 = vmatpush1.msra.mxu0 0.0
    %558 = vmatprep.subr.mxu0 0.0
    %559 = vmatpush1.msra.mxu0 0.0
    %560 = vmatprep.subr.mxu0 0.0
    %561 = vmatpush1.msra.mxu0 0.0
    %562 = vmatprep.subr.mxu0 0.0
    %563 = vmatpush1.msra.mxu0 0.0
    %564 = vmatprep.subr.mxu0 0.0
    %565 = vmatpush1.msra.mxu0 0.0
    %566 = vmatprep.subr.mxu0 0.0
    %567 = vmatpush1.msra.mxu0 0.0
    %568 = vmatprep.subr.mxu0 0.0
    %569 = vmatpush1.msra.mxu0 0.0
    %570 = vmatprep.subr.mxu0 0.0
    %571 = vmatpush1.msra.mxu0 0.0
    %572 = vmatprep.subr.mxu0 0.0
    %573 = vmatpush1.msra.mxu0 0.0
    %574 = vmatprep.subr.mxu0 0.0
    %575 = vmatpush1.msra.mxu0 0.0
    %576 = vmatprep.subr.mxu0 0.0
    %577 = vmatpush1.msra.mxu0 0.0
    %578 = vmatprep.subr.mxu0 0.0
    %579 = vmatpush1.msra.mxu0 0.0
    %580 = vmatprep.subr.mxu0 0.0
    %581 = vmatpush1.msra.mxu0 0.0
    %582 = vmatprep.subr.mxu0 0.0
    %583 = vmatpush1.msra.mxu0 0.0
    %584 = vmatprep.subr.mxu0 0.0
    %585 = vmatpush1.msra.mxu0 0.0
    %586 = vmatprep.mubr.f32.mxu0 0.0
    %587 = vmatmul.mubr.f32.gmra.mrb[0].mxu0 %v521
    %v588 = vpop.f32.mrb[0].mxu0
    %v589 = vadd.f32 %v514, %v588
    %v590 = vpop.f32.mrb[0].mxu0
    %591 = vdwg.mxu0
    %592 = vmax.xlane.f32.xlu0 %v589
    %v593 = vpop.xlane.xlu0 %592
    %v594 = vsub.f32 %v589, %v593
    %v595 = vmul.f32 %v594, 1.442695
    %v596 = vpow.pop %v595
    %597 = vadd.xlane.f32.xlu0 %v596
    %v598 = vpop.xlane.xlu0 %597
    %v599 = vlog2.pop %v598
    %v600 = vmul.f32 %v599, 0.6931472
    %v601 = vadd.f32 %v593, %v600
    %602 = vmax.xlane.f32.xlu0 %v514
    %v603 = vpop.xlane.xlu0 %602
    %v604 = vsub.f32 %v514, %v603
    %v605 = vmul.f32 %v604, 1.442695
    %v606 = vpow.pop %v605
    %607 = vadd.xlane.f32.xlu0 %v606
    %v608 = vpop.xlane.xlu0 %607
    %v609 = vlog2.pop %v608
    %v610 = vmul.f32 %v609, 0.6931472
    %v611 = vadd.f32 %v603, %v610
    %v612 = vadd.f32 %v601, -29.406033
    %v613 = vsub.f32 %v612, %v611
    %v614 = vsub.f32 0.0, %v613
    %s615 = smul.u32 0, 8
    %v616 = vlaneseq
    %v617 = vshrl.u32 %v616, 7
    %v618 = vstv %s615
    %v619 = vadd.s32 %v618, %v617
    %vm620 = vcmp.lt.s32.totalorder %v619, 8
    %v621 = vsel %vm620, %v614, 0.0
    %v622 = vrot.slane %v621, 4
    %v623 = vadd.f32 %v621, %v622
    %v624 = vrot.slane %v623, 2
    %v625 = vadd.f32 %v623, %v624
    %v626 = vrot.slane %v625, 1
    %v627 = vadd.f32 %v625, %v626
    %v628 = vmul.f32 %v627, 0.125
    %629 = vst [vmem:[%s3] sm:$0xff] %v628
    // Predicated region
    $region26: #{cond_kernel_forward.1} parent=1 // pred_check
      _
    $region27: #{cond_kernel_forward.1} parent=1 // pred_check_branch
      %631 = sbr.rel (0) target = $region29
    $region28: #{cond_kernel_forward.1} parent=1 // pred_region
      _
    $region29: #{cond_kernel_forward.1} parent=1 // pred_fallthru
      _
    // Predicated region
    $region30: #{cond_kernel_forward.1} parent=1 // pred_check
      _
    $region31: #{cond_kernel_forward.1} parent=1 // pred_check_branch
      %633 = sbr.rel (0) target = $region33
    $region32: #{cond_kernel_forward.1} parent=1 // pred_region
      _
    $region33: #{cond_kernel_forward.1} parent=1 // pred_fallthru
      _
    %634 = vsyncpa [#allocation3], 1
    %635 = vsyncpa [#allocation5], 1

</llo_original>
